<compile_context>
chip_gen: v7x
topology: tpu7x:2x2x1
jax: 0.10.0
libtpu: 0.0.40
codegen_flags: <defaults>
</compile_context>

<pallas_src>
import functools

import jax
import jax.numpy as jnp
from jax.experimental import pallas as pl
from jax.experimental.pallas import tpu as pltpu


def _round_up(n: int, m: int) -> int:
    return ((n + m - 1) // m) * m


def _mlp_kernel(xT_ref, w1t_ref, b1_ref, w2_ref, b2_ref, o_ref):
    # xT_ref:  (IN, TB)  f32 VMEM, lane-dense batch tile (pipelined over the grid)
    # w1t_ref: (Hp, IN)  f32 VMEM, resident (constant index_map)
    # b1_ref:  (Hp, 1)   f32 VMEM, resident
    # w2_ref:  (1, Hp)   f32 VMEM, resident (second-layer weights as a row)
    # b2_ref:  (1,)      f32 SMEM scalar
    # o_ref:   (1, TB)   f32 VMEM, lane-dense output row
    in_dim = xT_ref.shape[0]          # 3 (static)

    # Layer 1 on the VPU as rank-1 outer-product updates -- K=3 is far too small to
    # feed the MXU efficiently.  h lives in (hidden, batch) orientation so layer 2
    # needs no transpose and the output is already lane-major.
    h = w1t_ref[:, 0:1] * xT_ref[0:1, :] + b1_ref[...]          # (Hp, TB)
    for k in range(1, in_dim):                                   # static unroll (k = 1, 2)
        h = h + w1t_ref[:, k:k + 1] * xT_ref[k:k + 1, :]
    h = jnp.maximum(h, 0.0)                                      # ReLU (VPU)

    # Layer 2 on the MXU: (1, Hp) @ (Hp, TB) contracts h's sublane dim (no transpose),
    # output row is lane-dense -> a single dense vst per 128 columns.
    out_row = jnp.dot(w2_ref[...], h, preferred_element_type=jnp.float32)   # (1, TB)
    o_ref[...] = (out_row + b2_ref[0]).astype(o_ref.dtype)


@functools.partial(jax.jit, static_argnames=("block_rows", "min_pallas_rows"))
def net_yangge_1_forward(x, w1, b1, w2, b2, *, block_rows=8192, min_pallas_rows=1024):
    """Forward pass of NET_yangge_1 (num_layers=2).

    x:  (B, input_nodes) f32; w1: (input_nodes, hidden); b1: (hidden,);
    w2: (hidden, output_nodes); b2: (output_nodes,).  Returns (B, output_nodes) f32.
    """
    x = x.astype(jnp.float32)
    B, IN = x.shape
    H, OUT = w2.shape
    assert w1.shape == (IN, H) and b1.shape == (H,) and b2.shape == (OUT,)

    # Tiny batches: pallas_call launch + DMA setup dwarfs the few kFLOP of work.
    if B < min_pallas_rows:
        return (jnp.maximum(x @ w1 + b1, 0.0) @ w2 + b2).astype(jnp.float32)

    # Lane-dense output row + SMEM-scalar bias assume output_nodes == 1 (module default).
    assert OUT == 1, "Pallas path is specialized to output_nodes == 1"
    # TODO(synk): num_layers > 2 (extra hidden Linear+ReLU layers) not generated here.

    # Zero-pad hidden dim to a full 128-sublane tile (numerically identical:
    # ReLU(0 + 0) = 0 and the padded w2 entries are zero).
    Hp = _round_up(H, 128)
    w1t_p = jnp.pad(w1.T, ((0, Hp - H), (0, 0))) if Hp != H else w1.T      # (Hp, IN)
    b1_p = (jnp.pad(b1, (0, Hp - H)) if Hp != H else b1).reshape(Hp, 1)    # (Hp, 1)
    w2_p = jnp.pad(w2.T, ((0, 0), (0, Hp - H))) if Hp != H else w2.T       # (1, Hp)

    # Batch tiling: pick the grid size nb first (>= 2 whenever B > 128 so both v7x
    # TensorCores get a share), then TB = ceil(n128/nb)*128, which bounds padding to
    # at most (nb-1) 128-row groups (<~1.6% for large B at block_rows=8192).
    n128 = pl.cdiv(B, 128)
    k_max = max(block_rows // 128, 1)
    nb = max(min(2, n128), pl.cdiv(n128, k_max))
    TB = pl.cdiv(n128, nb) * 128
    B_pad = nb * TB

    # One small fused HBM pass: transpose x to (IN, B) (lane-dense batch) and pad.
    xT = x.T
    if B_pad != B:
        xT = jnp.pad(xT, ((0, 0), (0, B_pad - B)))

    cost = pl.CostEstimate(
        flops=2 * B_pad * (IN * Hp + Hp * OUT),
        transcendentals=0,
        bytes_accessed=4 * (B_pad * IN + B_pad * OUT + Hp * IN + Hp + Hp * OUT + OUT),
    )

    out_lane = pl.pallas_call(
        _mlp_kernel,
        out_shape=jax.ShapeDtypeStruct((1, B_pad), jnp.float32),
        grid_spec=pltpu.PrefetchScalarGridSpec(
            num_scalar_prefetch=0,
            grid=(nb,),
            in_specs=[
                pl.BlockSpec((IN, TB), lambda i: (0, i)),            # x^T tiles, pipelined, lane-dense
                pl.BlockSpec((Hp, IN), lambda i: (0, 0)),            # w1^T, resident
                pl.BlockSpec((Hp, 1), lambda i: (0, 0)),             # b1 column, resident
                pl.BlockSpec((1, Hp), lambda i: (0, 0)),             # w2 row, resident
                pl.BlockSpec(memory_space=pltpu.MemorySpace.SMEM),   # b2 scalar
            ],
            out_specs=pl.BlockSpec((1, TB), lambda i: (0, i)),       # lane-dense output row
        ),
        compiler_params=pltpu.CompilerParams(
            dimension_semantics=("parallel",),      # shard the batch grid across TCs (v7x)
            vmem_limit_bytes=32 * 1024 * 1024,      # room for TB=8192 h tile on v5e too
        ),
        cost_estimate=cost,
    )(xT, w1t_p, b1_p, w2_p, b2)

    return out_lane[0, :B].reshape(B, OUT)


def init_params(key, input_nodes=3, hidden_nodes=100, output_nodes=1):
    """Deterministic init mimicking nn.Linear's uniform(-1/sqrt(fan_in), 1/sqrt(fan_in))."""
    k1, k2, k3, k4 = jax.random.split(key, 4)
    bound1 = 1.0 / jnp.sqrt(input_nodes)
    bound2 = 1.0 / jnp.sqrt(hidden_nodes)
    # Stored pre-transposed: (in, out)
    w1 = jax.random.uniform(k1, (input_nodes, hidden_nodes), jnp.float32, -bound1, bound1)
    b1 = jax.random.uniform(k2, (hidden_nodes,), jnp.float32, -bound1, bound1)
    w2 = jax.random.uniform(k3, (hidden_nodes, output_nodes), jnp.float32, -bound2, bound2)
    b2 = jax.random.uniform(k4, (output_nodes,), jnp.float32, -bound2, bound2)
    return w1, b1, w2, b2


if __name__ == "__main__":
    key = jax.random.PRNGKey(0)
    kx, kp = jax.random.split(key)

    B, IN, H, OUT = 8, 3, 100, 1
    x = jax.random.normal(kx, (B, IN), dtype=jnp.float32)
    w1, b1, w2, b2 = init_params(kp, IN, H, OUT)

    def ref_forward(xv):
        h = jnp.maximum(jnp.dot(xv, w1, precision=jax.lax.Precision.HIGHEST) + b1, 0.0)
        return jnp.dot(h, w2, precision=jax.lax.Precision.HIGHEST) + b2

    # Force the Pallas path even at this tiny demo batch (normally it would bypass).
    out = net_yangge_1_forward(x, w1, b1, w2, b2, min_pallas_rows=0)
    out = jax.block_until_ready(out)

    ref = ref_forward(x)
    assert out.shape == (B, OUT)
    assert jnp.allclose(out, ref, atol=1e-4, rtol=1e-4)

    # Multi-block grid (nb=2) + pad-and-trim check (B not a multiple of 128 / the tile).
    B2 = 200
    x2 = jax.random.normal(jax.random.PRNGKey(1), (B2, IN), dtype=jnp.float32)
    out2 = jax.block_until_ready(
        net_yangge_1_forward(x2, w1, b1, w2, b2, block_rows=128, min_pallas_rows=0))
    ref2 = ref_forward(x2)
    assert out2.shape == (B2, OUT)
    assert jnp.allclose(out2, ref2, atol=1e-4, rtol=1e-4)

    print("KERNEL_OK")
</pallas_src>

<mosaic_0001>
module attributes {stable_mosaic.version = 11 : i64} {
  func.func @_mlp_kernel(%arg0: i32, %arg1: memref<3x128xf32, #tpu.memory_space<vmem>>, %arg2: memref<128x3xf32, #tpu.memory_space<vmem>>, %arg3: memref<128x1xf32, #tpu.memory_space<vmem>>, %arg4: memref<1x128xf32, #tpu.memory_space<vmem>>, %arg5: memref<1xf32, #tpu.memory_space<smem>>, %arg6: memref<1x128xf32, #tpu.memory_space<vmem>>) attributes {dimension_semantics = [#tpu.dimension_semantics<parallel>], iteration_bounds = array<i64: 1>, scalar_prefetch = 0 : i64, scratch_operands = 0 : i64, tpu.core_type = #tpu.core_type<tc>, window_params = [{transform_indices = @transform_0, window_bounds = array<i64: 3, 128>}, {pipeline_mode = #tpu.pipeline_mode<synchronous>, transform_indices = @transform_1, window_bounds = array<i64: 128, 3>}, {pipeline_mode = #tpu.pipeline_mode<synchronous>, transform_indices = @transform_2, window_bounds = array<i64: 128, 1>}, {pipeline_mode = #tpu.pipeline_mode<synchronous>, transform_indices = @transform_3, window_bounds = array<i64: 1, 128>}, {transform_indices = @transform_4, window_bounds = array<i64: 1>}, {transform_indices = @transform_5, window_bounds = array<i64: 1, 128>}]} {
    %c0 = arith.constant 0 : index
    %c0_0 = arith.constant 0 : index
    %0 = vector.load %arg2[%c0, %c0_0] : memref<128x3xf32, #tpu.memory_space<vmem>>, vector<128x1xf32>
    %c0_1 = arith.constant 0 : index
    %c0_2 = arith.constant 0 : index
    %1 = vector.load %arg1[%c0_1, %c0_2] : memref<3x128xf32, #tpu.memory_space<vmem>>, vector<1x128xf32>
    %2 = vector.broadcast %0 : vector<128x1xf32> to vector<128x128xf32>
    %3 = vector.broadcast %1 : vector<1x128xf32> to vector<128x128xf32>
    %4 = arith.mulf %2, %3 : vector<128x128xf32>
    %c0_3 = arith.constant 0 : index
    %c0_4 = arith.constant 0 : index
    %5 = vector.load %arg3[%c0_3, %c0_4] : memref<128x1xf32, #tpu.memory_space<vmem>>, vector<128x1xf32>
    %6 = vector.broadcast %5 : vector<128x1xf32> to vector<128x128xf32>
    %7 = arith.addf %4, %6 : vector<128x128xf32>
    %c0_5 = arith.constant 0 : index
    %c1 = arith.constant 1 : index
    %8 = vector.load %arg2[%c0_5, %c1] : memref<128x3xf32, #tpu.memory_space<vmem>>, vector<128x1xf32>
    %c1_6 = arith.constant 1 : index
    %c0_7 = arith.constant 0 : index
    %9 = vector.load %arg1[%c1_6, %c0_7] : memref<3x128xf32, #tpu.memory_space<vmem>>, vector<1x128xf32>
    %10 = vector.broadcast %8 : vector<128x1xf32> to vector<128x128xf32>
    %11 = vector.broadcast %9 : vector<1x128xf32> to vector<128x128xf32>
    %12 = arith.mulf %10, %11 : vector<128x128xf32>
    %13 = arith.addf %7, %12 : vector<128x128xf32>
    %c0_8 = arith.constant 0 : index
    %c2 = arith.constant 2 : index
    %14 = vector.load %arg2[%c0_8, %c2] : memref<128x3xf32, #tpu.memory_space<vmem>>, vector<128x1xf32>
    %c2_9 = arith.constant 2 : index
    %c0_10 = arith.constant 0 : index
    %15 = vector.load %arg1[%c2_9, %c0_10] : memref<3x128xf32, #tpu.memory_space<vmem>>, vector<1x128xf32>
    %16 = vector.broadcast %14 : vector<128x1xf32> to vector<128x128xf32>
    %17 = vector.broadcast %15 : vector<1x128xf32> to vector<128x128xf32>
    %18 = arith.mulf %16, %17 : vector<128x128xf32>
    %19 = arith.addf %13, %18 : vector<128x128xf32>
    %cst = arith.constant 0.000000e+00 : f32
    %20 = vector.broadcast %cst : f32 to vector<128x128xf32>
    %21 = arith.maximumf %19, %20 : vector<128x128xf32>
    %c0_11 = arith.constant 0 : index
    %c0_12 = arith.constant 0 : index
    %22 = vector.load %arg4[%c0_11, %c0_12] : memref<1x128xf32, #tpu.memory_space<vmem>>, vector<1x128xf32>
    %cst_13 = arith.constant dense<0.000000e+00> : vector<1x128xf32>
    %23 = tpu.matmul %22, %21, %cst_13 {dimension_numbers = #tpu.dot_dimension_numbers<[1], [0], [0], [1], [0, 0, 1, 1], [], []>} : vector<1x128xf32>, vector<128x128xf32>, vector<1x128xf32> -> vector<1x128xf32>
    %c0_14 = arith.constant 0 : index
    %24 = memref.load %arg5[%c0_14] : memref<1xf32, #tpu.memory_space<smem>>
    %25 = vector.broadcast %24 : f32 to vector<1x128xf32>
    %26 = arith.addf %23, %25 : vector<1x128xf32>
    %c0_15 = arith.constant 0 : index
    %c0_16 = arith.constant 0 : index
    %27 = vector.load %arg6[%c0_15, %c0_16] : memref<1x128xf32, #tpu.memory_space<vmem>>, vector<1x128xf32>
    tpu.vector_store %arg6[%c0_15, %c0_16], %26 {strides = array<i32>} : memref<1x128xf32, #tpu.memory_space<vmem>>, vector<1x128xf32>,
    return
  }
  func.func @transform_0(%arg0: i32) -> (i32, i32) {
    %c0_i32 = arith.constant 0 : i32
    %c0_i32_0 = arith.constant 0 : i32
    return %c0_i32, %arg0 : i32, i32
  }
  func.func @transform_1(%arg0: i32) -> (i32, i32) {
    %c0_i32 = arith.constant 0 : i32
    %c0_i32_0 = arith.constant 0 : i32
    %c0_i32_1 = arith.constant 0 : i32
    return %c0_i32, %c0_i32_0 : i32, i32
  }
  func.func @transform_2(%arg0: i32) -> (i32, i32) {
    %c0_i32 = arith.constant 0 : i32
    %c0_i32_0 = arith.constant 0 : i32
    %c0_i32_1 = arith.constant 0 : i32
    return %c0_i32, %c0_i32_0 : i32, i32
  }
  func.func @transform_3(%arg0: i32) -> (i32, i32) {
    %c0_i32 = arith.constant 0 : i32
    %c0_i32_0 = arith.constant 0 : i32
    %c0_i32_1 = arith.constant 0 : i32
    return %c0_i32, %c0_i32_0 : i32, i32
  }
  func.func @transform_4(%arg0: i32) -> i32 {
    %c0_i32 = arith.constant 0 : i32
    %c0_i32_0 = arith.constant 0 : i32
    return %c0_i32 : i32
  }
  func.func @transform_5(%arg0: i32) -> (i32, i32) {
    %c0_i32 = arith.constant 0 : i32
    %c0_i32_0 = arith.constant 0 : i32
    return %c0_i32, %arg0 : i32, i32
  }
}

</mosaic_0001>

<llo_original>
// kernel: net_yangge_1_forward.1
$region0: #{net_yangge_1_forward.1}
  #allocation0 [shape = 'u32[]', space=smem, size = 0x4, offset = 0x4, fixed_abs, tag = 'smem constant byte address 0x4 - core index']
  #allocation1 [shape = 'u32[144,128]{1,0:T(1,128)}', space=vmem, size = 0x12000, scoped, tag = 'internal scratch']
  #allocation2 [shape = 'f32[1]{0:T(128)S(6)}', space=smem, size = 0x200, scoped, tag = 'scoped memory for net_yangge_1_forward.1']
  %s0 = inlined_call_operand.vmem [shape: f32[3,128], index: 0, kind: input, shape index: {}]
  %s1 = inlined_call_operand.vmem [shape: f32[128,3], index: 1, kind: input, shape index: {}]
  %s2 = inlined_call_operand.vmem [shape: f32[128,1], index: 2, kind: input, shape index: {}]
  %s3 = inlined_call_operand.vmem [shape: f32[1,128], index: 3, kind: input, shape index: {}]
  %s4 = inlined_call_operand.<no memory space> [shape: f32[1], index: 4, kind: input, shape index: {}]
  %s5 = inlined_call_operand.vmem [shape: f32[1,128], index: 5, kind: output, shape index: {}]
  %s6 = sld [smem:[#allocation0]]
  $region30: #{net_yangge_1_forward.1} parent=0
    _
  %s8 = ssub.s32 1, %s6
  %s9 = scalar_select 0, %s8, %s6
  %10 = sst [smem:[#allocation2]] %s4
  // Predicated region
  $region2: #{net_yangge_1_forward.1} parent=0 // pred_check
    _
  $region3: #{net_yangge_1_forward.1} parent=0 // pred_check_branch
    %12 = sbr.rel (0) target = $region5
  $region4: #{net_yangge_1_forward.1} parent=0 // pred_region
    _
  $region5: #{net_yangge_1_forward.1} parent=0 // pred_fallthru
    _
  // Predicated region
  $region6: #{net_yangge_1_forward.1} parent=0 // pred_check
    _
  $region7: #{net_yangge_1_forward.1} parent=0 // pred_check_branch
    %14 = sbr.rel (0) target = $region9
  $region8: #{net_yangge_1_forward.1} parent=0 // pred_region
    _
  $region9: #{net_yangge_1_forward.1} parent=0 // pred_fallthru
    _
  // Predicated region
  $region10: #{net_yangge_1_forward.1} parent=0 // pred_check
    _
  $region11: #{net_yangge_1_forward.1} parent=0 // pred_check_branch
    %16 = sbr.rel (0) target = $region13
  $region12: #{net_yangge_1_forward.1} parent=0 // pred_region
    _
  $region13: #{net_yangge_1_forward.1} parent=0 // pred_fallthru
    _
  // Predicated region
  $region14: #{net_yangge_1_forward.1} parent=0 // pred_check
    _
  $region15: #{net_yangge_1_forward.1} parent=0 // pred_check_branch
    %18 = sbr.rel (0) target = $region17
  $region16: #{net_yangge_1_forward.1} parent=0 // pred_region
    _
  $region17: #{net_yangge_1_forward.1} parent=0 // pred_fallthru
    _
  // Predicated region
  $region18: #{net_yangge_1_forward.1} parent=0 // pred_check
    _
  $region19: #{net_yangge_1_forward.1} parent=0 // pred_check_branch
    %20 = sbr.rel (0) target = $region21
  $region20: #{net_yangge_1_forward.1} parent=0 // pred_region
    _
  $region21: #{net_yangge_1_forward.1} parent=0 // pred_fallthru
    _
  %v21 = vld [vmem:[%s1] sm:$0xff]
  %v22 = vld [vmem:[%s1 + $0x8] sm:$0xff]
  %v23 = vld [vmem:[%s1 + $0x10] sm:$0xff]
  %v24 = vld [vmem:[%s1 + $0x18] sm:$0xff]
  %v25 = vld [vmem:[%s1 + $0x20] sm:$0xff]
  %v26 = vld [vmem:[%s1 + $0x28] sm:$0xff]
  %v27 = vld [vmem:[%s1 + $0x30] sm:$0xff]
  %v28 = vld [vmem:[%s1 + $0x38] sm:$0xff]
  %v29 = vld [vmem:[%s1 + $0x40] sm:$0xff]
  %v30 = vld [vmem:[%s1 + $0x48] sm:$0xff]
  %v31 = vld [vmem:[%s1 + $0x50] sm:$0xff]
  %v32 = vld [vmem:[%s1 + $0x58] sm:$0xff]
  %v33 = vld [vmem:[%s1 + $0x60] sm:$0xff]
  %v34 = vld [vmem:[%s1 + $0x68] sm:$0xff]
  %v35 = vld [vmem:[%s1 + $0x70] sm:$0xff]
  %v36 = vld [vmem:[%s1 + $0x78] sm:$0xff]
  %v37 = vld [vmem:[%s0] sm:$0x1]
  %39 = vset.pattern.permute.xlu0 0
  %40 = vperm.xlu0 %39, %v21
  %v41 = vpop.permute.xlu0 %40
  %44 = vset.pattern.permute.xlu0 0
  %45 = vperm.xlu0 %44, %v22
  %v46 = vpop.permute.xlu0 %45
  %49 = vset.pattern.permute.xlu0 0
  %50 = vperm.xlu0 %49, %v23
  %v51 = vpop.permute.xlu0 %50
  %54 = vset.pattern.permute.xlu0 0
  %55 = vperm.xlu0 %54, %v24
  %v56 = vpop.permute.xlu0 %55
  %59 = vset.pattern.permute.xlu0 0
  %60 = vperm.xlu0 %59, %v25
  %v61 = vpop.permute.xlu0 %60
  %64 = vset.pattern.permute.xlu0 0
  %65 = vperm.xlu0 %64, %v26
  %v66 = vpop.permute.xlu0 %65
  %69 = vset.pattern.permute.xlu0 0
  %70 = vperm.xlu0 %69, %v27
  %v71 = vpop.permute.xlu0 %70
  %74 = vset.pattern.permute.xlu0 0
  %75 = vperm.xlu0 %74, %v28
  %v76 = vpop.permute.xlu0 %75
  %79 = vset.pattern.permute.xlu0 0
  %80 = vperm.xlu0 %79, %v29
  %v81 = vpop.permute.xlu0 %80
  %84 = vset.pattern.permute.xlu0 0
  %85 = vperm.xlu0 %84, %v30
  %v86 = vpop.permute.xlu0 %85
  %89 = vset.pattern.permute.xlu0 0
  %90 = vperm.xlu0 %89, %v31
  %v91 = vpop.permute.xlu0 %90
  %94 = vset.pattern.permute.xlu0 0
  %95 = vperm.xlu0 %94, %v32
  %v96 = vpop.permute.xlu0 %95
  %99 = vset.pattern.permute.xlu0 0
  %100 = vperm.xlu0 %99, %v33
  %v101 = vpop.permute.xlu0 %100
  %104 = vset.pattern.permute.xlu0 0
  %105 = vperm.xlu0 %104, %v34
  %v106 = vpop.permute.xlu0 %105
  %109 = vset.pattern.permute.xlu0 0
  %110 = vperm.xlu0 %109, %v35
  %v111 = vpop.permute.xlu0 %110
  %114 = vset.pattern.permute.xlu0 0
  %115 = vperm.xlu0 %114, %v36
  %v116 = vpop.permute.xlu0 %115
  %v118 = vlaneseq
  %v119 = vshrl.u32 %v118, 7
  %v120 = vsub.s32 0, %v119
  %v121 = vrot.slane %v37, %v120
  %v122 = vmul.f32 %v41, %v121
  %v123 = vmul.f32 %v46, %v121
  %v124 = vmul.f32 %v51, %v121
  %v125 = vmul.f32 %v56, %v121
  %v126 = vmul.f32 %v61, %v121
  %v127 = vmul.f32 %v66, %v121
  %v128 = vmul.f32 %v71, %v121
  %v129 = vmul.f32 %v76, %v121
  %v130 = vmul.f32 %v81, %v121
  %v131 = vmul.f32 %v86, %v121
  %v132 = vmul.f32 %v91, %v121
  %v133 = vmul.f32 %v96, %v121
  %v134 = vmul.f32 %v101, %v121
  %v135 = vmul.f32 %v106, %v121
  %v136 = vmul.f32 %v111, %v121
  %v137 = vmul.f32 %v116, %v121
  %v138 = vld [vmem:[%s2] sm:$0xff]
  %v139 = vld [vmem:[%s2 + $0x8] sm:$0xff]
  %v140 = vld [vmem:[%s2 + $0x10] sm:$0xff]
  %v141 = vld [vmem:[%s2 + $0x18] sm:$0xff]
  %v142 = vld [vmem:[%s2 + $0x20] sm:$0xff]
  %v143 = vld [vmem:[%s2 + $0x28] sm:$0xff]
  %v144 = vld [vmem:[%s2 + $0x30] sm:$0xff]
  %v145 = vld [vmem:[%s2 + $0x38] sm:$0xff]
  %v146 = vld [vmem:[%s2 + $0x40] sm:$0xff]
  %v147 = vld [vmem:[%s2 + $0x48] sm:$0xff]
  %v148 = vld [vmem:[%s2 + $0x50] sm:$0xff]
  %v149 = vld [vmem:[%s2 + $0x58] sm:$0xff]
  %v150 = vld [vmem:[%s2 + $0x60] sm:$0xff]
  %v151 = vld [vmem:[%s2 + $0x68] sm:$0xff]
  %v152 = vld [vmem:[%s2 + $0x70] sm:$0xff]
  %v153 = vld [vmem:[%s2 + $0x78] sm:$0xff]
  %155 = vset.pattern.permute.xlu0 0
  %156 = vperm.xlu0 %155, %v138
  %v157 = vpop.permute.xlu0 %156
  %160 = vset.pattern.permute.xlu0 0
  %161 = vperm.xlu0 %160, %v139
  %v162 = vpop.permute.xlu0 %161
  %165 = vset.pattern.permute.xlu0 0
  %166 = vperm.xlu0 %165, %v140
  %v167 = vpop.permute.xlu0 %166
  %170 = vset.pattern.permute.xlu0 0
  %171 = vperm.xlu0 %170, %v141
  %v172 = vpop.permute.xlu0 %171
  %175 = vset.pattern.permute.xlu0 0
  %176 = vperm.xlu0 %175, %v142
  %v177 = vpop.permute.xlu0 %176
  %180 = vset.pattern.permute.xlu0 0
  %181 = vperm.xlu0 %180, %v143
  %v182 = vpop.permute.xlu0 %181
  %185 = vset.pattern.permute.xlu0 0
  %186 = vperm.xlu0 %185, %v144
  %v187 = vpop.permute.xlu0 %186
  %190 = vset.pattern.permute.xlu0 0
  %191 = vperm.xlu0 %190, %v145
  %v192 = vpop.permute.xlu0 %191
  %195 = vset.pattern.permute.xlu0 0
  %196 = vperm.xlu0 %195, %v146
  %v197 = vpop.permute.xlu0 %196
  %200 = vset.pattern.permute.xlu0 0
  %201 = vperm.xlu0 %200, %v147
  %v202 = vpop.permute.xlu0 %201
  %205 = vset.pattern.permute.xlu0 0
  %206 = vperm.xlu0 %205, %v148
  %v207 = vpop.permute.xlu0 %206
  %210 = vset.pattern.permute.xlu0 0
  %211 = vperm.xlu0 %210, %v149
  %v212 = vpop.permute.xlu0 %211
  %215 = vset.pattern.permute.xlu0 0
  %216 = vperm.xlu0 %215, %v150
  %v217 = vpop.permute.xlu0 %216
  %220 = vset.pattern.permute.xlu0 0
  %221 = vperm.xlu0 %220, %v151
  %v222 = vpop.permute.xlu0 %221
  %225 = vset.pattern.permute.xlu0 0
  %226 = vperm.xlu0 %225, %v152
  %v227 = vpop.permute.xlu0 %226
  %230 = vset.pattern.permute.xlu0 0
  %231 = vperm.xlu0 %230, %v153
  %v232 = vpop.permute.xlu0 %231
  %v234 = vadd.f32 %v122, %v157
  %v235 = vadd.f32 %v123, %v162
  %v236 = vadd.f32 %v124, %v167
  %v237 = vadd.f32 %v125, %v172
  %v238 = vadd.f32 %v126, %v177
  %v239 = vadd.f32 %v127, %v182
  %v240 = vadd.f32 %v128, %v187
  %v241 = vadd.f32 %v129, %v192
  %v242 = vadd.f32 %v130, %v197
  %v243 = vadd.f32 %v131, %v202
  %v244 = vadd.f32 %v132, %v207
  %v245 = vadd.f32 %v133, %v212
  %v246 = vadd.f32 %v134, %v217
  %v247 = vadd.f32 %v135, %v222
  %v248 = vadd.f32 %v136, %v227
  %v249 = vadd.f32 %v137, %v232
  %v250 = vld [vmem:[%s0 + $0x1] sm:$0x1]
  %251 = vset.pattern.permute.xlu0 1
  %252 = vperm.xlu0 %251, %v21
  %v253 = vpop.permute.xlu0 %252
  %255 = vset.pattern.permute.xlu0 1
  %256 = vperm.xlu0 %255, %v22
  %v257 = vpop.permute.xlu0 %256
  %259 = vset.pattern.permute.xlu0 1
  %260 = vperm.xlu0 %259, %v23
  %v261 = vpop.permute.xlu0 %260
  %263 = vset.pattern.permute.xlu0 1
  %264 = vperm.xlu0 %263, %v24
  %v265 = vpop.permute.xlu0 %264
  %267 = vset.pattern.permute.xlu0 1
  %268 = vperm.xlu0 %267, %v25
  %v269 = vpop.permute.xlu0 %268
  %271 = vset.pattern.permute.xlu0 1
  %272 = vperm.xlu0 %271, %v26
  %v273 = vpop.permute.xlu0 %272
  %275 = vset.pattern.permute.xlu0 1
  %276 = vperm.xlu0 %275, %v27
  %v277 = vpop.permute.xlu0 %276
  %279 = vset.pattern.permute.xlu0 1
  %280 = vperm.xlu0 %279, %v28
  %v281 = vpop.permute.xlu0 %280
  %283 = vset.pattern.permute.xlu0 1
  %284 = vperm.xlu0 %283, %v29
  %v285 = vpop.permute.xlu0 %284
  %287 = vset.pattern.permute.xlu0 1
  %288 = vperm.xlu0 %287, %v30
  %v289 = vpop.permute.xlu0 %288
  %291 = vset.pattern.permute.xlu0 1
  %292 = vperm.xlu0 %291, %v31
  %v293 = vpop.permute.xlu0 %292
  %295 = vset.pattern.permute.xlu0 1
  %296 = vperm.xlu0 %295, %v32
  %v297 = vpop.permute.xlu0 %296
  %299 = vset.pattern.permute.xlu0 1
  %300 = vperm.xlu0 %299, %v33
  %v301 = vpop.permute.xlu0 %300
  %303 = vset.pattern.permute.xlu0 1
  %304 = vperm.xlu0 %303, %v34
  %v305 = vpop.permute.xlu0 %304
  %307 = vset.pattern.permute.xlu0 1
  %308 = vperm.xlu0 %307, %v35
  %v309 = vpop.permute.xlu0 %308
  %311 = vset.pattern.permute.xlu0 1
  %312 = vperm.xlu0 %311, %v36
  %v313 = vpop.permute.xlu0 %312
  %v315 = vlaneseq
  %v316 = vshrl.u32 %v315, 7
  %v317 = vsub.s32 0, %v316
  %v318 = vrot.slane %v250, %v317
  %v319 = vmul.f32 %v253, %v318
  %v320 = vmul.f32 %v257, %v318
  %v321 = vmul.f32 %v261, %v318
  %v322 = vmul.f32 %v265, %v318
  %v323 = vmul.f32 %v269, %v318
  %v324 = vmul.f32 %v273, %v318
  %v325 = vmul.f32 %v277, %v318
  %v326 = vmul.f32 %v281, %v318
  %v327 = vmul.f32 %v285, %v318
  %v328 = vmul.f32 %v289, %v318
  %v329 = vmul.f32 %v293, %v318
  %v330 = vmul.f32 %v297, %v318
  %v331 = vmul.f32 %v301, %v318
  %v332 = vmul.f32 %v305, %v318
  %v333 = vmul.f32 %v309, %v318
  %v334 = vmul.f32 %v313, %v318
  %v335 = vadd.f32 %v234, %v319
  %v336 = vadd.f32 %v235, %v320
  %v337 = vadd.f32 %v236, %v321
  %v338 = vadd.f32 %v237, %v322
  %v339 = vadd.f32 %v238, %v323
  %v340 = vadd.f32 %v239, %v324
  %v341 = vadd.f32 %v240, %v325
  %v342 = vadd.f32 %v241, %v326
  %v343 = vadd.f32 %v242, %v327
  %v344 = vadd.f32 %v243, %v328
  %v345 = vadd.f32 %v244, %v329
  %v346 = vadd.f32 %v245, %v330
  %v347 = vadd.f32 %v246, %v331
  %v348 = vadd.f32 %v247, %v332
  %v349 = vadd.f32 %v248, %v333
  %v350 = vadd.f32 %v249, %v334
  %v351 = vld [vmem:[%s0 + $0x2] sm:$0x1]
  %352 = vset.pattern.permute.xlu0 2
  %353 = vperm.xlu0 %352, %v21
  %v354 = vpop.permute.xlu0 %353
  %356 = vset.pattern.permute.xlu0 2
  %357 = vperm.xlu0 %356, %v22
  %v358 = vpop.permute.xlu0 %357
  %360 = vset.pattern.permute.xlu0 2
  %361 = vperm.xlu0 %360, %v23
  %v362 = vpop.permute.xlu0 %361
  %364 = vset.pattern.permute.xlu0 2
  %365 = vperm.xlu0 %364, %v24
  %v366 = vpop.permute.xlu0 %365
  %368 = vset.pattern.permute.xlu0 2
  %369 = vperm.xlu0 %368, %v25
  %v370 = vpop.permute.xlu0 %369
  %372 = vset.pattern.permute.xlu0 2
  %373 = vperm.xlu0 %372, %v26
  %v374 = vpop.permute.xlu0 %373
  %376 = vset.pattern.permute.xlu0 2
  %377 = vperm.xlu0 %376, %v27
  %v378 = vpop.permute.xlu0 %377
  %380 = vset.pattern.permute.xlu0 2
  %381 = vperm.xlu0 %380, %v28
  %v382 = vpop.permute.xlu0 %381
  %384 = vset.pattern.permute.xlu0 2
  %385 = vperm.xlu0 %384, %v29
  %v386 = vpop.permute.xlu0 %385
  %388 = vset.pattern.permute.xlu0 2
  %389 = vperm.xlu0 %388, %v30
  %v390 = vpop.permute.xlu0 %389
  %392 = vset.pattern.permute.xlu0 2
  %393 = vperm.xlu0 %392, %v31
  %v394 = vpop.permute.xlu0 %393
  %396 = vset.pattern.permute.xlu0 2
  %397 = vperm.xlu0 %396, %v32
  %v398 = vpop.permute.xlu0 %397
  %400 = vset.pattern.permute.xlu0 2
  %401 = vperm.xlu0 %400, %v33
  %v402 = vpop.permute.xlu0 %401
  %404 = vset.pattern.permute.xlu0 2
  %405 = vperm.xlu0 %404, %v34
  %v406 = vpop.permute.xlu0 %405
  %408 = vset.pattern.permute.xlu0 2
  %409 = vperm.xlu0 %408, %v35
  %v410 = vpop.permute.xlu0 %409
  %412 = vset.pattern.permute.xlu0 2
  %413 = vperm.xlu0 %412, %v36
  %v414 = vpop.permute.xlu0 %413
  %v416 = vlaneseq
  %v417 = vshrl.u32 %v416, 7
  %v418 = vsub.s32 0, %v417
  %v419 = vrot.slane %v351, %v418
  %v420 = vmul.f32 %v354, %v419
  %v421 = vmul.f32 %v358, %v419
  %v422 = vmul.f32 %v362, %v419
  %v423 = vmul.f32 %v366, %v419
  %v424 = vmul.f32 %v370, %v419
  %v425 = vmul.f32 %v374, %v419
  %v426 = vmul.f32 %v378, %v419
  %v427 = vmul.f32 %v382, %v419
  %v428 = vmul.f32 %v386, %v419
  %v429 = vmul.f32 %v390, %v419
  %v430 = vmul.f32 %v394, %v419
  %v431 = vmul.f32 %v398, %v419
  %v432 = vmul.f32 %v402, %v419
  %v433 = vmul.f32 %v406, %v419
  %v434 = vmul.f32 %v410, %v419
  %v435 = vmul.f32 %v414, %v419
  %v436 = vadd.f32 %v335, %v420
  %v437 = vadd.f32 %v336, %v421
  %v438 = vadd.f32 %v337, %v422
  %v439 = vadd.f32 %v338, %v423
  %v440 = vadd.f32 %v339, %v424
  %v441 = vadd.f32 %v340, %v425
  %v442 = vadd.f32 %v341, %v426
  %v443 = vadd.f32 %v342, %v427
  %v444 = vadd.f32 %v343, %v428
  %v445 = vadd.f32 %v344, %v429
  %v446 = vadd.f32 %v345, %v430
  %v447 = vadd.f32 %v346, %v431
  %v448 = vadd.f32 %v347, %v432
  %v449 = vadd.f32 %v348, %v433
  %v450 = vadd.f32 %v349, %v434
  %v451 = vadd.f32 %v350, %v435
  %v452 = vmax.f32 %v436, 0.0
  %v453 = vmax.f32 %v437, 0.0
  %v454 = vmax.f32 %v438, 0.0
  %v455 = vmax.f32 %v439, 0.0
  %v456 = vmax.f32 %v440, 0.0
  %v457 = vmax.f32 %v441, 0.0
  %v458 = vmax.f32 %v442, 0.0
  %v459 = vmax.f32 %v443, 0.0
  %v460 = vmax.f32 %v444, 0.0
  %v461 = vmax.f32 %v445, 0.0
  %v462 = vmax.f32 %v446, 0.0
  %v463 = vmax.f32 %v447, 0.0
  %v464 = vmax.f32 %v448, 0.0
  %v465 = vmax.f32 %v449, 0.0
  %v466 = vmax.f32 %v450, 0.0
  %v467 = vmax.f32 %v451, 0.0
  %v468 = vld [vmem:[%s3] sm:$0x1]
  %s469 = sld [smem:[#allocation2]]
  %v470 = vstv %s469
  %471 = vmatprep.subr.mxu0 0.0
  %472 = vmatpush1.msra.mxu0 %v452
  %473 = vmatprep.subr.mxu0 0.0
  %474 = vmatpush1.msra.mxu0 %v453
  %475 = vmatprep.subr.mxu0 0.0
  %476 = vmatpush1.msra.mxu0 %v454
  %477 = vmatprep.subr.mxu0 0.0
  %478 = vmatpush1.msra.mxu0 %v455
  %479 = vmatprep.subr.mxu0 0.0
  %480 = vmatpush1.msra.mxu0 %v456
  %481 = vmatprep.subr.mxu0 0.0
  %482 = vmatpush1.msra.mxu0 %v457
  %483 = vmatprep.subr.mxu0 0.0
  %484 = vmatpush1.msra.mxu0 %v458
  %485 = vmatprep.subr.mxu0 0.0
  %486 = vmatpush1.msra.mxu0 %v459
  %487 = vmatprep.subr.mxu0 0.0
  %488 = vmatpush1.msra.mxu0 %v460
  %489 = vmatprep.subr.mxu0 0.0
  %490 = vmatpush1.msra.mxu0 %v461
  %491 = vmatprep.subr.mxu0 0.0
  %492 = vmatpush1.msra.mxu0 %v462
  %493 = vmatprep.subr.mxu0 0.0
  %494 = vmatpush1.msra.mxu0 %v463
  %495 = vmatprep.subr.mxu0 0.0
  %496 = vmatpush1.msra.mxu0 %v464
  %497 = vmatprep.subr.mxu0 0.0
  %498 = vmatpush1.msra.mxu0 %v465
  %499 = vmatprep.subr.mxu0 0.0
  %500 = vmatpush1.msra.mxu0 %v466
  %501 = vmatprep.subr.mxu0 0.0
  %502 = vmatpush1.msra.mxu0 %v467
  %503 = vmatprep.subr.mxu0 0.0
  %504 = vmatpush1.msra.mxu0 0.0
  %505 = vmatprep.subr.mxu0 0.0
  %506 = vmatpush1.msra.mxu0 0.0
  %507 = vmatprep.subr.mxu0 0.0
  %508 = vmatpush1.msra.mxu0 0.0
  %509 = vmatprep.subr.mxu0 0.0
  %510 = vmatpush1.msra.mxu0 0.0
  %511 = vmatprep.subr.mxu0 0.0
  %512 = vmatpush1.msra.mxu0 0.0
  %513 = vmatprep.subr.mxu0 0.0
  %514 = vmatpush1.msra.mxu0 0.0
  %515 = vmatprep.subr.mxu0 0.0
  %516 = vmatpush1.msra.mxu0 0.0
  %517 = vmatprep.subr.mxu0 0.0
  %518 = vmatpush1.msra.mxu0 0.0
  %519 = vmatprep.subr.mxu0 0.0
  %520 = vmatpush1.msra.mxu0 0.0
  %521 = vmatprep.subr.mxu0 0.0
  %522 = vmatpush1.msra.mxu0 0.0
  %523 = vmatprep.subr.mxu0 0.0
  %524 = vmatpush1.msra.mxu0 0.0
  %525 = vmatprep.subr.mxu0 0.0
  %526 = vmatpush1.msra.mxu0 0.0
  %527 = vmatprep.subr.mxu0 0.0
  %528 = vmatpush1.msra.mxu0 0.0
  %529 = vmatprep.subr.mxu0 0.0
  %530 = vmatpush1.msra.mxu0 0.0
  %531 = vmatprep.subr.mxu0 0.0
  %532 = vmatpush1.msra.mxu0 0.0
  %533 = vmatprep.subr.mxu0 0.0
  %534 = vmatpush1.msra.mxu0 0.0
  %535 = vmatprep.mubr.f32.mxu0 0.0
  %536 = vmatmul.mubr.f32.gmra.mrb[0].mxu0 %v468
  %v537 = vpop.f32.mrb[0].mxu0
  %v538 = vadd.f32 %v470, %v537
  %v539 = vpop.f32.mrb[0].mxu0
  %540 = vdwg.mxu0
  %541 = vst [vmem:[%s5] sm:$0x1] %v538
  // Predicated region
  $region22: #{net_yangge_1_forward.1} parent=0 // pred_check
    _
  $region23: #{net_yangge_1_forward.1} parent=0 // pred_check_branch
    %543 = sbr.rel (0) target = $region25
  $region24: #{net_yangge_1_forward.1} parent=0 // pred_region
    _
  $region25: #{net_yangge_1_forward.1} parent=0 // pred_fallthru
    _
  // Predicated region
  $region26: #{net_yangge_1_forward.1} parent=0 // pred_check
    _
  $region27: #{net_yangge_1_forward.1} parent=0 // pred_check_branch
    %545 = sbr.rel (0) target = $region29
  $region28: #{net_yangge_1_forward.1} parent=0 // pred_region
    _
  $region29: #{net_yangge_1_forward.1} parent=0 // pred_fallthru
    _

</llo_original>
